<compile_context>
chip_gen: v7x
topology: tpu7x:2x2x1
jax: 0.10.0
libtpu: 0.0.40
codegen_flags: <defaults>
</compile_context>

<pallas_src>
import functools

import jax
import jax.numpy as jnp
from jax import lax
from jax.experimental import pallas as pl
from jax.experimental.pallas import tpu as pltpu


def _round_up(x, m):
    return ((int(x) + m - 1) // m) * m


def _vmem_budget_bytes():
    """Generation-aware usable-VMEM budget (~82% of physical capacity)."""
    try:
        cap = int(pltpu.get_tpu_info().vmem_capacity_bytes)
    except Exception:
        cap = 64 << 20                      # conservative fallback (v7x-sized)
    return max(16 << 20, (cap * 82) // 100)


def _auto_tile_d(n, b, b_pad, d, emb_itemsize, tgt_itemsize, budget):
    """Largest lane-multiple D tile fitting resident + double-buffered streams."""
    d128 = _round_up(d, 128)
    b8 = _round_up(b, 8)
    resident = n * n * 4 + b_pad * n * 2 + (2 << 20)     # simw + wb + slack
    per_col = 2 * n * emb_itemsize + 2 * b8 * tgt_itemsize + b8 * 4
    avail = max(budget - resident, 128 * per_col)
    tile = int((avail // per_col) // 128) * 128
    tile = max(128, min(tile, d128))
    if tile >= d:
        return d, 1                                        # single full-width tile
    return tile, -(-d // tile)


def _rebuild_loss_kernel(sim_hbm, emb_ref, tgt_ref, loss_ref, w_hbm,
                         simw, wb_ref, acc_ref, wsem, *,
                         inv_temperature, oral_batch, b_pad, n, d, tile_d,
                         tiles_per_core, mask_cols):
    # sim_hbm: (N,N) f32 HBM (pl.ANY)     emb_ref: (N, tile_d) streamed
    # tgt_ref: (B, tile_d) streamed       loss_ref: (1,8,128) per-core SSE partial
    # w_hbm:   (N,N) f32 HBM (pl.ANY)     simw: (N,N) f32 scratch (sim in / w out)
    # wb_ref:  (b_pad,N) bf16 scratch     acc_ref: (B, tile_d) f32 scratch
    c = pl.program_id(0)       # TensorCore split (parallel axis)
    di = pl.program_id(1)      # D-tile index within this core's share (arbitrary)

    @pl.when(di == 0)
    def _init():
        acc_ref[...] = jnp.zeros_like(acc_ref)

        # Rows [0:b_pad] of sim -> VMEM (both cores need them for the matmul LHS).
        pltpu.sync_copy(sim_hbm.at[pl.ds(0, b_pad)], simw.at[pl.ds(0, b_pad)])

        top = simw[pl.ds(0, b_pad), :] * inv_temperature
        row = lax.broadcasted_iota(jnp.int32, (b_pad, n), 0)
        col = lax.broadcasted_iota(jnp.int32, (b_pad, n), 1)
        # Reference does `sim - eye(N)*1e12`; pinning the diagonal to -1e12 is
        # numerically identical after softmax (exp underflows to 0 either way).
        top = jnp.where(row == col, jnp.float32(-1e12), top)
        m = jnp.max(top, axis=-1, keepdims=True)
        e = jnp.exp(top - m)
        w_top = e / jnp.sum(e, axis=-1, keepdims=True)     # exact divide: w is returned
        wb_ref[...] = jnp.where(row < oral_batch, w_top,
                                jnp.float32(0.0)).astype(wb_ref.dtype)

        # Only core 0 materializes + writes back the full rebuild-weight matrix.
        @pl.when(c == 0)
        def _emit_w():
            simw[pl.ds(0, b_pad), :] = w_top
            if b_pad < n:                                   # static
                rest_rows = n - b_pad
                pltpu.sync_copy(sim_hbm.at[pl.ds(b_pad, rest_rows)],
                                simw.at[pl.ds(b_pad, rest_rows)])
                rest = simw[pl.ds(b_pad, rest_rows), :] * inv_temperature
                rrow = lax.broadcasted_iota(jnp.int32, (rest_rows, n), 0)
                rcol = lax.broadcasted_iota(jnp.int32, (rest_rows, n), 1)
                rest = jnp.where(rcol == rrow + b_pad, jnp.float32(-1e12), rest)
                rm = jnp.max(rest, axis=-1, keepdims=True)
                re_ = jnp.exp(rest - rm)
                simw[pl.ds(b_pad, rest_rows), :] = (
                    re_ / jnp.sum(re_, axis=-1, keepdims=True))
            # Kick the (N,N) writeback off in the background; it overlaps with the
            # emb/tgt streaming and is waited on at this core's last D tile.
            pltpu.make_async_copy(simw, w_hbm, wsem).start()

    # ------- streamed part: rebuild = wb @ emb_tile, accumulate (diff)^2 --------
    emb_bf16 = emb_ref[...].astype(jnp.bfloat16)            # in-kernel cast (free filler)
    rebuild = jnp.dot(wb_ref[...], emb_bf16, preferred_element_type=jnp.float32)
    diff = rebuild[:oral_batch, :] - tgt_ref[...].astype(jnp.float32)
    if mask_cols:                     # static: tail tile and/or phantom core-1 tile
        g = c * tiles_per_core + di                          # global D-tile index
        lane = lax.broadcasted_iota(jnp.int32, diff.shape, 1)
        diff = jnp.where(lane < (d - g * tile_d), diff, jnp.float32(0.0))
    acc_ref[...] += diff * diff                              # pure VPU, no per-step reduce

    @pl.when(di == tiles_per_core - 1)
    def _finalize():
        loss_ref[...] = jnp.broadcast_to(jnp.sum(acc_ref[...]), loss_ref.shape)

        @pl.when(c == 0)
        def _wait_w():
            pltpu.make_async_copy(simw, w_hbm, wsem).wait()


def rebuild_loss(similarity_matrix, batch_emb_om, batch_emb_o, batch_x, *,
                 temperature=0.2, rbtp=0, tile_d=None):
    """Pallas implementation of RebuildLoss.forward -> (loss, rebuild_weight_matrix)."""
    n = batch_emb_om.shape[0]                  # cur_batch_shape[0]
    b = batch_x.shape[0]                       # oral_batch_shape[0]
    assert b <= n
    if rbtp == 0:
        target = batch_emb_o
    elif rbtp == 1:
        target = batch_x
    else:
        raise ValueError("rbtp must be 0 or 1")

    # Pure reshapes (folded by XLA) -- no wrapper-side cast or pad passes.
    emb_flat = batch_emb_om.reshape(n, -1)
    d = emb_flat.shape[1]
    tgt_flat = target.reshape(b, -1)
    assert tgt_flat.shape[1] == d, "target must flatten to the same feature dim"
    sim = similarity_matrix.astype(jnp.float32)             # no-op when already f32

    b_pad = min(_round_up(b, 16), n)                         # bf16 sublane packing
    budget = _vmem_budget_bytes()

    if tile_d is None:
        tile_d, num_d_tiles = _auto_tile_d(
            n, b, b_pad, d, emb_flat.dtype.itemsize, tgt_flat.dtype.itemsize, budget)
    else:
        tile_d = int(tile_d)
        if tile_d >= d:
            tile_d, num_d_tiles = d, 1
        else:
            tile_d = max(128, (tile_d // 128) * 128)
            num_d_tiles = -(-d // tile_d)

    # Split the D tiles across the two v7x TensorCores; on single-core chips the
    # leading "parallel" axis is just a cheap serial loop.
    num_splits = 2 if num_d_tiles >= 2 else 1
    tiles_per_core = -(-num_d_tiles // num_splits)
    phantom = (num_splits * tiles_per_core != num_d_tiles)
    mask_cols = (d % tile_d != 0) or phantom

    if phantom:
        def col_map(c, di):
            return (0, jnp.minimum(c * tiles_per_core + di, num_d_tiles - 1))
    else:
        def col_map(c, di):
            return (0, c * tiles_per_core + di)

    kernel = functools.partial(
        _rebuild_loss_kernel,
        inv_temperature=float(1.0 / temperature),
        oral_batch=int(b), b_pad=int(b_pad), n=int(n), d=int(d),
        tile_d=int(tile_d), tiles_per_core=int(tiles_per_core),
        mask_cols=bool(mask_cols))

    cost = pl.CostEstimate(
        flops=2 * b_pad * n * d + 6 * n * n,
        transcendentals=n * n + b_pad * n,
        bytes_accessed=((n * n + b_pad * n) * 4 + n * n * 4
                        + n * d * emb_flat.dtype.itemsize
                        + b * d * tgt_flat.dtype.itemsize
                        + num_splits * 8 * 128 * 4))

    partials, w = pl.pallas_call(
        kernel,
        out_shape=(
            jax.ShapeDtypeStruct((num_splits, 8, 128), jnp.float32),  # per-core SSE
            jax.ShapeDtypeStruct((n, n), jnp.float32),                # rebuild weights
        ),
        grid_spec=pltpu.PrefetchScalarGridSpec(
            num_scalar_prefetch=0,
            grid=(num_splits, tiles_per_core),
            in_specs=[
                pl.BlockSpec(memory_space=pl.ANY),                    # sim: manual DMA
                pl.BlockSpec((n, tile_d), col_map),                   # emb: streamed
                pl.BlockSpec((b, tile_d), col_map),                   # tgt: streamed
            ],
            out_specs=(
                pl.BlockSpec((1, 8, 128), lambda c, di: (c, 0, 0)),   # per-core partial
                pl.BlockSpec(memory_space=pl.ANY),                    # w: manual DMA
            ),
            scratch_shapes=[
                pltpu.VMEM((n, n), jnp.float32),        # sim in / softmax(w) out
                pltpu.VMEM((b_pad, n), jnp.bfloat16),   # masked bf16 matmul LHS
                pltpu.VMEM((b, tile_d), jnp.float32),   # squared-error accumulator
                pltpu.SemaphoreType.DMA,                # w writeback semaphore
            ],
        ),
        compiler_params=pltpu.CompilerParams(
            dimension_semantics=("parallel", "arbitrary"),
            vmem_limit_bytes=int(budget)),
        cost_estimate=cost,
    )(sim, emb_flat, tgt_flat)

    loss = jnp.sum(partials[:, 0, 0]) / jnp.float32(b * d)
    return loss, w


def _reference(similarity_matrix, batch_emb_om, batch_emb_o, batch_x,
               *, temperature=0.2, rbtp=0):
    # Pure-JAX f32 reference mirroring the PyTorch forward.
    n = batch_emb_om.shape[0]
    b = batch_x.shape[0]
    sim = similarity_matrix / temperature
    sim = sim - jnp.eye(n, dtype=jnp.float32) * 1e12
    w = jax.nn.softmax(sim, axis=-1)
    emb_flat = batch_emb_om.reshape(n, -1)
    rebuild = w @ emb_flat
    target = (batch_emb_o if rbtp == 0 else batch_x).reshape(b, -1)
    loss = jnp.mean((rebuild[:b] - target) ** 2)
    return loss, w


if __name__ == "__main__":
    # Config 1: B=4, positive_nums=5 -> N=24 rows, C=4, L=96 -> D=384.
    # tile_d=128 -> 3 D tiles split 2/2 across the core axis (one phantom, masked);
    # b_pad=16 < N exercises the split softmax (wb rows vs. remaining w rows).
    N, B, C, L = 24, 4, 4, 96
    k_sim, k_om, k_o, k_x = jax.random.split(jax.random.PRNGKey(0), 4)
    similarity_matrix = jax.random.normal(k_sim, (N, N), dtype=jnp.float32)
    batch_emb_om = jax.random.normal(k_om, (N, C, L), dtype=jnp.float32)
    batch_emb_o = jax.random.normal(k_o, (B, C, L), dtype=jnp.float32)
    batch_x = jax.random.normal(k_x, (B, C, L), dtype=jnp.float32)

    loss, weights = rebuild_loss(similarity_matrix, batch_emb_om, batch_emb_o,
                                 batch_x, temperature=0.2, rbtp=0, tile_d=128)
    jax.block_until_ready((loss, weights))
    ref_loss, ref_w = _reference(similarity_matrix, batch_emb_om, batch_emb_o,
                                 batch_x, temperature=0.2, rbtp=0)
    assert jnp.allclose(weights, ref_w, rtol=5e-3, atol=1e-5), \
        float(jnp.max(jnp.abs(weights - ref_w)))
    # bf16 MXU inputs -> relaxed loss tolerance vs the f32 reference.
    assert jnp.allclose(loss, ref_loss, rtol=2e-2, atol=1e-3), \
        (float(loss), float(ref_loss))

    # Config 2: rbtp=1, D = 3*40 = 120 (not a lane multiple) -> single full-width
    # auto-selected tile, b_pad == N, single-split grid, in-kernel tail handling.
    N2, B2, C2, L2 = 8, 4, 3, 40
    k2 = jax.random.split(jax.random.PRNGKey(1), 4)
    sim2 = jax.random.normal(k2[0], (N2, N2), dtype=jnp.float32)
    emb_om2 = jax.random.normal(k2[1], (N2, C2, L2), dtype=jnp.float32)
    emb_o2 = jax.random.normal(k2[2], (B2, C2, L2), dtype=jnp.float32)
    x2 = jax.random.normal(k2[3], (B2, C2, L2), dtype=jnp.float32)

    loss2, w2 = rebuild_loss(sim2, emb_om2, emb_o2, x2, temperature=0.2, rbtp=1)
    jax.block_until_ready((loss2, w2))
    ref_loss2, ref_w2 = _reference(sim2, emb_om2, emb_o2, x2,
                                   temperature=0.2, rbtp=1)
    assert jnp.allclose(w2, ref_w2, rtol=5e-3, atol=1e-5)
    assert jnp.allclose(loss2, ref_loss2, rtol=2e-2, atol=1e-3), \
        (float(loss2), float(ref_loss2))

    print("KERNEL_OK")
</pallas_src>

<mosaic_0001>
module attributes {stable_mosaic.version = 11 : i64} {
  func.func @_rebuild_loss_kernel(%arg0: i32, %arg1: i32, %arg2: memref<24x24xf32, #tpu.memory_space<any>>, %arg3: memref<24x128xf32, #tpu.memory_space<vmem>>, %arg4: memref<4x128xf32, #tpu.memory_space<vmem>>, %arg5: memref<1x8x128xf32, #tpu.memory_space<vmem>>, %arg6: memref<24x24xf32, #tpu.memory_space<any>>, %arg7: memref<24x24xf32, #tpu.memory_space<vmem>>, %arg8: memref<16x24xbf16, #tpu.memory_space<vmem>>, %arg9: memref<4x128xf32, #tpu.memory_space<vmem>>, %arg10: memref<!tpu.dma_semaphore, #tpu.memory_space<semaphore_mem>>) attributes {dimension_semantics = [#tpu.dimension_semantics<parallel>, #tpu.dimension_semantics<arbitrary>], iteration_bounds = array<i64: 2, 2>, scalar_prefetch = 0 : i64, scratch_operands = 4 : i64, tpu.core_type = #tpu.core_type<tc>, window_params = [{}, {transform_indices = @transform_1, window_bounds = array<i64: 24, 128>}, {transform_indices = @transform_2, window_bounds = array<i64: 4, 128>}, {transform_indices = @transform_3, window_bounds = array<i64: 1, 8, 128>}, {}]} {
    %c0_i32 = arith.constant 0 : i32
    %0 = arith.cmpi eq, %arg1, %c0_i32 : i32
    %1 = arith.extui %0 : i1 to i32
    %c0_i32_0 = arith.constant 0 : i32
    %2 = arith.cmpi ne, %1, %c0_i32_0 : i32
    scf.if %2 {
      %cst_12 = arith.constant 0.000000e+00 : f32
      %26 = vector.broadcast %cst_12 : f32 to vector<4x128xf32>
      %c0_13 = arith.constant 0 : index
      %c0_14 = arith.constant 0 : index
      %27 = vector.load %arg9[%c0_13, %c0_14] : memref<4x128xf32, #tpu.memory_space<vmem>>, vector<4x128xf32>
      tpu.vector_store %arg9[%c0_13, %c0_14], %26 {strides = array<i32>} : memref<4x128xf32, #tpu.memory_space<vmem>>, vector<4x128xf32>,
      "tpu.region"() ({
        %54 = tpu.sem_alloc : memref<!tpu.dma_semaphore, #tpu.memory_space<semaphore_mem>>
        %c0_i32_26 = arith.constant 0 : i32
        %c0_i32_27 = arith.constant 0 : i32
        %55 = tpu.memref_slice %arg2[%c0_i32_26, %c0_i32_27] : memref<24x24xf32, #tpu.memory_space<any>> -> memref<16x24xf32, #tpu.memory_space<any>>
        %c0_i32_28 = arith.constant 0 : i32
        %c0_i32_29 = arith.constant 0 : i32
        %56 = tpu.memref_slice %arg7[%c0_i32_28, %c0_i32_29] : memref<24x24xf32, #tpu.memory_space<vmem>> -> memref<16x24xf32, #tpu.memory_space<vmem>>
        tpu.enqueue_dma source(%55 : memref<16x24xf32, #tpu.memory_space<any>>) target(%56 : memref<16x24xf32, #tpu.memory_space<vmem>>) target_semaphore(%54 : memref<!tpu.dma_semaphore, #tpu.memory_space<semaphore_mem>>)
        %c0_i32_30 = arith.constant 0 : i32
        %c0_i32_31 = arith.constant 0 : i32
        %57 = tpu.memref_slice %arg2[%c0_i32_30, %c0_i32_31] : memref<24x24xf32, #tpu.memory_space<any>> -> memref<16x24xf32, #tpu.memory_space<any>>
        %c0_i32_32 = arith.constant 0 : i32
        %c0_i32_33 = arith.constant 0 : i32
        %58 = tpu.memref_slice %arg7[%c0_i32_32, %c0_i32_33] : memref<24x24xf32, #tpu.memory_space<vmem>> -> memref<16x24xf32, #tpu.memory_space<vmem>>
        tpu.wait_dma2 semaphore(%54 : memref<!tpu.dma_semaphore, #tpu.memory_space<semaphore_mem>>) src(%57 : memref<16x24xf32, #tpu.memory_space<any>>) dst(%58 : memref<16x24xf32, #tpu.memory_space<vmem>>)
        tpu.yield
      }) : () -> ()
      %c0_15 = arith.constant 0 : index
      %c0_16 = arith.constant 0 : index
      %28 = vector.load %arg7[%c0_15, %c0_16] : memref<24x24xf32, #tpu.memory_space<vmem>>, vector<16x24xf32>
      %cst_17 = arith.constant 5.000000e+00 : f32
      %29 = vector.broadcast %cst_17 : f32 to vector<16x24xf32>
      %30 = arith.mulf %28, %29 : vector<16x24xf32>
      %31 = tpu.iota {dimensions = array<i32: 0>} : vector<16x24xi32>
      %32 = tpu.iota {dimensions = array<i32: 1>} : vector<16x24xi32>
      %33 = arith.cmpi eq, %31, %32 : vector<16x24xi32>
      %cst_18 = arith.constant -9.99999995E+11 : f32
      %34 = vector.broadcast %cst_18 : f32 to vector<16x24xf32>
      %35 = arith.select %33, %34, %30 : vector<16x24xi1>, vector<16x24xf32>
      %cst_19 = arith.constant dense<0xFF800000> : vector<16xf32>
      %36 = vector.multi_reduction <maximumf>, %35, %cst_19 [1] : vector<16x24xf32> to vector<16xf32>
      %37 = vector.shape_cast %36 : vector<16xf32> to vector<16x1xf32>
      %38 = vector.broadcast %37 : vector<16x1xf32> to vector<16x24xf32>
      %39 = arith.subf %35, %38 : vector<16x24xf32>
      %40 = math.exp %39 : vector<16x24xf32>
      %cst_20 = arith.constant dense<0.000000e+00> : vector<16xf32>
      %41 = vector.multi_reduction <add>, %40, %cst_20 [1] : vector<16x24xf32> to vector<16xf32>
      %42 = vector.shape_cast %41 : vector<16xf32> to vector<16x1xf32>
      %43 = vector.broadcast %42 : vector<16x1xf32> to vector<16x24xf32>
      %44 = arith.divf %40, %43 : vector<16x24xf32>
      %c4_i32 = arith.constant 4 : i32
      %45 = vector.broadcast %c4_i32 : i32 to vector<16x24xi32>
      %46 = arith.cmpi slt, %31, %45 : vector<16x24xi32>
      %cst_21 = arith.constant 0.000000e+00 : f32
      %47 = vector.broadcast %cst_21 : f32 to vector<16x24xf32>
      %48 = arith.select %46, %44, %47 : vector<16x24xi1>, vector<16x24xf32>
      %49 = arith.truncf %48 : vector<16x24xf32> to vector<16x24xbf16>
      %c0_22 = arith.constant 0 : index
      %c0_23 = arith.constant 0 : index
      %50 = vector.load %arg8[%c0_22, %c0_23] : memref<16x24xbf16, #tpu.memory_space<vmem>>, vector<16x24xbf16>
      tpu.vector_store %arg8[%c0_22, %c0_23], %49 {strides = array<i32>} : memref<16x24xbf16, #tpu.memory_space<vmem>>, vector<16x24xbf16>,
      %c0_i32_24 = arith.constant 0 : i32
      %51 = arith.cmpi eq, %arg0, %c0_i32_24 : i32
      %52 = arith.extui %51 : i1 to i32
      %c0_i32_25 = arith.constant 0 : i32
      %53 = arith.cmpi ne, %52, %c0_i32_25 : i32
      scf.if %53 {
        %c0_26 = arith.constant 0 : index
        %c0_27 = arith.constant 0 : index
        %54 = vector.load %arg7[%c0_26, %c0_27] : memref<24x24xf32, #tpu.memory_space<vmem>>, vector<16x24xf32>
        tpu.vector_store %arg7[%c0_26, %c0_27], %44 {strides = array<i32>} : memref<24x24xf32, #tpu.memory_space<vmem>>, vector<16x24xf32>,
        "tpu.region"() ({
          %75 = tpu.sem_alloc : memref<!tpu.dma_semaphore, #tpu.memory_space<semaphore_mem>>
          %c16_i32_35 = arith.constant 16 : i32
          %c0_i32_36 = arith.constant 0 : i32
          %76 = tpu.memref_slice %arg2[%c16_i32_35, %c0_i32_36] : memref<24x24xf32, #tpu.memory_space<any>> -> memref<8x24xf32, #tpu.memory_space<any>>
          %c16_i32_37 = arith.constant 16 : i32
          %c0_i32_38 = arith.constant 0 : i32
          %77 = tpu.memref_slice %arg7[%c16_i32_37, %c0_i32_38] : memref<24x24xf32, #tpu.memory_space<vmem>> -> memref<8x24xf32, #tpu.memory_space<vmem>>
          tpu.enqueue_dma source(%76 : memref<8x24xf32, #tpu.memory_space<any>>) target(%77 : memref<8x24xf32, #tpu.memory_space<vmem>>) target_semaphore(%75 : memref<!tpu.dma_semaphore, #tpu.memory_space<semaphore_mem>>)
          %c16_i32_39 = arith.constant 16 : i32
          %c0_i32_40 = arith.constant 0 : i32
          %78 = tpu.memref_slice %arg2[%c16_i32_39, %c0_i32_40] : memref<24x24xf32, #tpu.memory_space<any>> -> memref<8x24xf32, #tpu.memory_space<any>>
          %c16_i32_41 = arith.constant 16 : i32
          %c0_i32_42 = arith.constant 0 : i32
          %79 = tpu.memref_slice %arg7[%c16_i32_41, %c0_i32_42] : memref<24x24xf32, #tpu.memory_space<vmem>> -> memref<8x24xf32, #tpu.memory_space<vmem>>
          tpu.wait_dma2 semaphore(%75 : memref<!tpu.dma_semaphore, #tpu.memory_space<semaphore_mem>>) src(%78 : memref<8x24xf32, #tpu.memory_space<any>>) dst(%79 : memref<8x24xf32, #tpu.memory_space<vmem>>)
          tpu.yield
        }) : () -> ()
        %c16 = arith.constant 16 : index
        %c0_28 = arith.constant 0 : index
        %55 = vector.load %arg7[%c16, %c0_28] : memref<24x24xf32, #tpu.memory_space<vmem>>, vector<8x24xf32>
        %cst_29 = arith.constant 5.000000e+00 : f32
        %56 = vector.broadcast %cst_29 : f32 to vector<8x24xf32>
        %57 = arith.mulf %55, %56 : vector<8x24xf32>
        %58 = tpu.iota {dimensions = array<i32: 0>} : vector<8x24xi32>
        %59 = tpu.iota {dimensions = array<i32: 1>} : vector<8x24xi32>
        %c16_i32 = arith.constant 16 : i32
        %60 = vector.broadcast %c16_i32 : i32 to vector<8x24xi32>
        %61 = arith.addi %58, %60 : vector<8x24xi32>
        %62 = arith.cmpi eq, %59, %61 : vector<8x24xi32>
        %cst_30 = arith.constant -9.99999995E+11 : f32
        %63 = vector.broadcast %cst_30 : f32 to vector<8x24xf32>
        %64 = arith.select %62, %63, %57 : vector<8x24xi1>, vector<8x24xf32>
        %cst_31 = arith.constant dense<0xFF800000> : vector<8xf32>
        %65 = vector.multi_reduction <maximumf>, %64, %cst_31 [1] : vector<8x24xf32> to vector<8xf32>
        %66 = vector.shape_cast %65 : vector<8xf32> to vector<8x1xf32>
        %67 = vector.broadcast %66 : vector<8x1xf32> to vector<8x24xf32>
        %68 = arith.subf %64, %67 : vector<8x24xf32>
        %69 = math.exp %68 : vector<8x24xf32>
        %cst_32 = arith.constant dense<0.000000e+00> : vector<8xf32>
        %70 = vector.multi_reduction <add>, %69, %cst_32 [1] : vector<8x24xf32> to vector<8xf32>
        %71 = vector.shape_cast %70 : vector<8xf32> to vector<8x1xf32>
        %72 = vector.broadcast %71 : vector<8x1xf32> to vector<8x24xf32>
        %73 = arith.divf %69, %72 : vector<8x24xf32>
        %c16_33 = arith.constant 16 : index
        %c0_34 = arith.constant 0 : index
        %74 = vector.load %arg7[%c16_33, %c0_34] : memref<24x24xf32, #tpu.memory_space<vmem>>, vector<8x24xf32>
        tpu.vector_store %arg7[%c16_33, %c0_34], %73 {strides = array<i32>} : memref<24x24xf32, #tpu.memory_space<vmem>>, vector<8x24xf32>,
        tpu.enqueue_dma source(%arg7 : memref<24x24xf32, #tpu.memory_space<vmem>>) target(%arg6 : memref<24x24xf32, #tpu.memory_space<any>>) target_semaphore(%arg10 : memref<!tpu.dma_semaphore, #tpu.memory_space<semaphore_mem>>)
      } else {
      }
    } else {
    }
    %c0 = arith.constant 0 : index
    %c0_1 = arith.constant 0 : index
    %3 = vector.load %arg3[%c0, %c0_1] : memref<24x128xf32, #tpu.memory_space<vmem>>, vector<24x128xf32>
    %4 = arith.truncf %3 : vector<24x128xf32> to vector<24x128xbf16>
    %c0_2 = arith.constant 0 : index
    %c0_3 = arith.constant 0 : index
    %5 = vector.load %arg8[%c0_2, %c0_3] : memref<16x24xbf16, #tpu.memory_space<vmem>>, vector<16x24xbf16>
    %cst = arith.constant dense<0.000000e+00> : vector<16x128xf32>
    %6 = tpu.matmul %5, %4, %cst {dimension_numbers = #tpu.dot_dimension_numbers<[1], [0], [0], [1], [0, 0, 1, 1], [], []>} : vector<16x24xbf16>, vector<24x128xbf16>, vector<16x128xf32> -> vector<16x128xf32>
    %7 = vector.extract_strided_slice %6 {offsets = [0, 0], sizes = [4, 128], strides = [1, 1]} : vector<16x128xf32> to vector<4x128xf32>
    %c0_4 = arith.constant 0 : index
    %c0_5 = arith.constant 0 : index
    %8 = vector.load %arg4[%c0_4, %c0_5] : memref<4x128xf32, #tpu.memory_space<vmem>>, vector<4x128xf32>
    %9 = arith.subf %7, %8 : vector<4x128xf32>
    %c2_i32 = arith.constant 2 : i32
    %10 = arith.muli %arg0, %c2_i32 : i32
    %11 = arith.addi %10, %arg1 : i32
    %12 = tpu.iota {dimensions = array<i32: 1>} : vector<4x128xi32>
    %c128_i32 = arith.constant 128 : i32
    %13 = arith.muli %11, %c128_i32 : i32
    %c384_i32 = arith.constant 384 : i32
    %14 = arith.subi %c384_i32, %13 : i32
    %15 = vector.broadcast %14 : i32 to vector<4x128xi32>
    %16 = arith.cmpi slt, %12, %15 : vector<4x128xi32>
    %cst_6 = arith.constant 0.000000e+00 : f32
    %17 = vector.broadcast %cst_6 : f32 to vector<4x128xf32>
    %18 = arith.select %16, %9, %17 : vector<4x128xi1>, vector<4x128xf32>
    %c0_7 = arith.constant 0 : index
    %c0_8 = arith.constant 0 : index
    %19 = vector.load %arg9[%c0_7, %c0_8] : memref<4x128xf32, #tpu.memory_space<vmem>>, vector<4x128xf32>
    %20 = arith.mulf %18, %18 : vector<4x128xf32>
    %21 = arith.addf %19, %20 : vector<4x128xf32>
    %c0_9 = arith.constant 0 : index
    %c0_10 = arith.constant 0 : index
    %22 = vector.load %arg9[%c0_9, %c0_10] : memref<4x128xf32, #tpu.memory_space<vmem>>, vector<4x128xf32>
    tpu.vector_store %arg9[%c0_9, %c0_10], %21 {strides = array<i32>} : memref<4x128xf32, #tpu.memory_space<vmem>>, vector<4x128xf32>,
    %c1_i32 = arith.constant 1 : i32
    %23 = arith.cmpi eq, %arg1, %c1_i32 : i32
    %24 = arith.extui %23 : i1 to i32
    %c0_i32_11 = arith.constant 0 : i32
    %25 = arith.cmpi ne, %24, %c0_i32_11 : i32
    scf.if %25 {
      %c0_12 = arith.constant 0 : index
      %c0_13 = arith.constant 0 : index
      %26 = vector.load %arg9[%c0_12, %c0_13] : memref<4x128xf32, #tpu.memory_space<vmem>>, vector<4x128xf32>
      %27 = vector.shape_cast %26 : vector<4x128xf32> to vector<1x4x128xf32>
      %cst_14 = arith.constant dense<0.000000e+00> : vector<1xf32>
      %28 = vector.multi_reduction <add>, %27, %cst_14 [1, 2] : vector<1x4x128xf32> to vector<1xf32>
      %29 = vector.shape_cast %28 : vector<1xf32> to vector<1x1x1xf32>
      %30 = vector.extract %29[0, 0, 0] : f32 from vector<1x1x1xf32>
      %31 = vector.broadcast %30 : f32 to vector<1x8x128xf32>
      %c0_15 = arith.constant 0 : index
      %c0_16 = arith.constant 0 : index
      %c0_17 = arith.constant 0 : index
      %32 = vector.load %arg5[%c0_15, %c0_16, %c0_17] : memref<1x8x128xf32, #tpu.memory_space<vmem>>, vector<1x8x128xf32>
      tpu.vector_store %arg5[%c0_15, %c0_16, %c0_17], %31 {strides = array<i32>} : memref<1x8x128xf32, #tpu.memory_space<vmem>>, vector<1x8x128xf32>,
      %c0_i32_18 = arith.constant 0 : i32
      %33 = arith.cmpi eq, %arg0, %c0_i32_18 : i32
      %34 = arith.extui %33 : i1 to i32
      %c0_i32_19 = arith.constant 0 : i32
      %35 = arith.cmpi ne, %34, %c0_i32_19 : i32
      scf.if %35 {
        tpu.wait_dma2 semaphore(%arg10 : memref<!tpu.dma_semaphore, #tpu.memory_space<semaphore_mem>>) src(%arg7 : memref<24x24xf32, #tpu.memory_space<vmem>>) dst(%arg6 : memref<24x24xf32, #tpu.memory_space<any>>)
      } else {
      }
    } else {
    }
    return
  }
  func.func @transform_1(%arg0: i32, %arg1: i32) -> (i32, i32) {
    %c2_i32 = arith.constant 2 : i32
    %0 = arith.muli %arg0, %c2_i32 : i32
    %1 = arith.addi %0, %arg1 : i32
    %c2_i32_0 = arith.constant 2 : i32
    %2 = arith.minsi %1, %c2_i32_0 : i32
    %c0_i32 = arith.constant 0 : i32
    %c0_i32_1 = arith.constant 0 : i32
    return %c0_i32, %2 : i32, i32
  }
  func.func @transform_2(%arg0: i32, %arg1: i32) -> (i32, i32) {
    %c2_i32 = arith.constant 2 : i32
    %0 = arith.muli %arg0, %c2_i32 : i32
    %1 = arith.addi %0, %arg1 : i32
    %c2_i32_0 = arith.constant 2 : i32
    %2 = arith.minsi %1, %c2_i32_0 : i32
    %c0_i32 = arith.constant 0 : i32
    %c0_i32_1 = arith.constant 0 : i32
    return %c0_i32, %2 : i32, i32
  }
  func.func @transform_3(%arg0: i32, %arg1: i32) -> (i32, i32, i32) {
    %c0_i32 = arith.constant 0 : i32
    %c0_i32_0 = arith.constant 0 : i32
    %c0_i32_1 = arith.constant 0 : i32
    return %arg0, %c0_i32, %c0_i32_0 : i32, i32, i32
  }
}

</mosaic_0001>

<llo_original>
// kernel: tpu_custom_call.1
$region0: #{tpu_custom_call.1}
  #allocation0 [shape = 'u32[]', space=smem, size = 0x4, offset = 0x4, fixed_abs, tag = 'smem constant byte address 0x4 - core index']
  #allocation1 [shape = 'u32[144,128]{1,0:T(1,128)}', space=vmem, size = 0x12000, scoped, tag = 'internal scratch']
  #allocation2 [shape = 'f32[24,24]{1,0:T(8,128)}', space=vmem, size = 0x3000, scoped, tag = 'scratch operand']
  #allocation3 [shape = 'bf16[16,24]{1,0:T(16,128)(2,1)}', space=vmem, size = 0x1000, scoped, tag = 'scratch operand']
  #allocation4 [shape = 'f32[4,128]{1,0:T(4,128)}', space=vmem, size = 0x800, scoped, tag = 'scratch operand']
  #allocation5 [shape = 's32[1]{0}', space=sflag, size = 0x4, scoped, tag = 'scratch operand']
  #allocation13 [shape = 's32[]', space=sflag, size = 0x4, offset = 0, fixed_abs, tag = 'sflag constant byte address 0x0 - dummy sync flag']
  #allocation14 [shape = 's32[]', space=sflag, size = 0x4, offset = 0, fixed_abs, tag = 'sflag constant byte address 0x0 - dummy sync flag']
  #allocation15 [shape = 'u32[]', space=smem, size = 0x4, offset = 0x44, fixed_abs, tag = 'smem constant byte address 0x44 - assertion arg 0']
  #allocation16 [shape = 'u32[]', space=smem, size = 0x4, offset = 0x48, fixed_abs, tag = 'smem constant byte address 0x48 - assertion arg 1']
  #allocation18 [shape = 's32[]', space=sflag, size = 0x4, offset = 0, fixed_abs, tag = 'sflag constant byte address 0x0 - dummy sync flag']
  #allocation19 [shape = 's32[]', space=sflag, size = 0x4, offset = 0, fixed_abs, tag = 'sflag constant byte address 0x0 - dummy sync flag']
  #allocation20 [shape = 's32[]', space=sflag, size = 0x4, offset = 0, fixed_abs, tag = 'sflag constant byte address 0x0 - dummy sync flag']
  #allocation21 [shape = 's32[]', space=sflag, size = 0x4, offset = 0, fixed_abs, tag = 'sflag constant byte address 0x0 - dummy sync flag']
  %s0 = inlined_call_operand.hbm [shape: f32[24,24], index: 0, kind: input, shape index: {}]
  %s1 = inlined_call_operand.hbm [shape: f32[24,384], index: 1, kind: input, shape index: {}]
  %s2 = inlined_call_operand.hbm [shape: f32[4,384], index: 2, kind: input, shape index: {}]
  %s3 = inlined_call_operand.hbm [shape: f32[2,8,128], index: 3, kind: output, shape index: {0}]
  %s4 = inlined_call_operand.hbm [shape: f32[24,24], index: 4, kind: output, shape index: {1}]
  %5 = xla_tuple %s3, %s4
  %s6 = sld [smem:[#allocation0]]
  $region79: #{tpu_custom_call.1} parent=0
    _
  %s8 = ssub.s32 1, %s6
  %s9 = scalar_select 0, %s8, %s6
  $region1: #{tpu_custom_call.1} parent=0
    #allocation6 [shape = 'u8[24576]{0}', space=vmem, size = 0x6000, scoped, tag = 'input window, operand 1']
    #allocation7 [shape = 's32[2]{0}', space=sflag, size = 0x8, scoped, tag = 'scoped memory for tpu_custom_call.1']
    #allocation8 [shape = 's32[2]{0}', space=sflag, size = 0x8, scoped, tag = 'scoped memory for tpu_custom_call.1']
    #allocation9 [shape = 'u8[4096]{0}', space=vmem, size = 0x1000, scoped, tag = 'input window, operand 2']
    #allocation10 [shape = 's32[2]{0}', space=sflag, size = 0x8, scoped, tag = 'scoped memory for tpu_custom_call.1']
    #allocation11 [shape = 'u8[8192]{0}', space=vmem, size = 0x2000, scoped, tag = 'output window, operand 0']
    %10 = vsyncpa [#allocation7], 0
    %s11 = scalar_lea.sflag [#allocation7], 1
    %12 = vsyncpa %s11, 0
    %13 = vsyncpa [#allocation10], 0
    %s14 = scalar_lea.sflag [#allocation10], 1
    %15 = vsyncpa %s14, 0
    %16 = vsyncpa [#allocation8], 0
    %s17 = scalar_lea.sflag [#allocation8], 1
    %18 = vsyncpa %s17, 0
    loop: start=0, step=1, limit=6
    $region2: #{tpu_custom_call.1} parent=1 // loop_pre_header
      _
    $region3: #{tpu_custom_call.1} parent=1 // loop_header
      %s20 = sphi 0, %s24
      %p21 = scmp.ge.s32.totalorder %s20, 6
      %s27 = sphi 0, %s39
      %s28 = sphi 0, %s35
      %s29 = sphi 0, %s27
      %s30 = sphi 0, %s28
      %s31 = sphi 0, %s29
      %s32 = sphi 0, %s30
      %s50 = sphi 0, %s52
      %s53 = sphi 0, %s50
      %s54 = sphi 0, %s53
      %s70 = sphi 0, %s54
      %s84 = sphi 0, %s86
      %s87 = sphi 0, %s84
      %s88 = sphi 0, %s87
      %s104 = sphi 0, %s88
      %s110 = sphi 0, %s112
      %s113 = sphi 0, %s110
      %s114 = sphi 0, %s113
      %s130 = sphi 0, %s114
    $region4: #{tpu_custom_call.1} parent=1 // loop_header_branch
      %23 = sbr.rel (%p21) target = $region8
    $region5: #{tpu_custom_call.1} parent=1 // loop_body
      %s25 = ssub.s32 %s20, 1
      %s26 = ssub.s32 %s20, 2
      %s33 = sadd.s32 1, %s28
      %p34 = scmp.ge.s32.totalorder %s33, 2
      %s35 = scalar_select %p34, 0, %s33
      %s36 = sadd.s32 1, %s27
      %s37 = scalar_select %p34, %s36, %s27
      %p38 = scmp.ge.s32.totalorder %s37, 2
      %s39 = scalar_select %p38, 0, %s37
      %s40 = smul.u32 %s27, 2
      %s41 = sadd.s32 %s40, %s28
      %p42 = scmp.lt.s32.totalorder %s41, 2
      %s43 = scalar_select %p42, %s41, 2
      %s44 = smul.u32 %s39, 2
      %s45 = sadd.s32 %s44, %s35
      %p46 = scmp.lt.s32.totalorder %s45, 2
      %s47 = scalar_select %p46, %s45, 2
      %s48 = ssub.s32 %s43, %s47
      %p49 = scmp.eq.s32.totalorder %s48, 0
      %s51 = sadd.s32 %s50, 1
      %s52 = scalar_select %p49, %s50, %s51
      %p55 = pneg %p49
      %p56 = scmp.eq.s32.totalorder %s20, 3
      %p57 = por %p55, %p56
      %p58 = scmp.ne.s32.totalorder %s50, %s53
      %p59 = scmp.eq.s32.totalorder %s20, 0
      %p60 = por %p58, %p59
      %p61 = scmp.ne.s32.totalorder %s50, %s53
      %p62 = scmp.eq.s32.totalorder %s25, 3
      %p63 = por %p61, %p62
      %p64 = scmp.ne.s32.totalorder %s53, %s54
      %p65 = scmp.eq.s32.totalorder %s25, 0
      %p66 = por %p64, %p65
      %p67 = scmp.ne.s32.totalorder %s53, %s54
      %p68 = scmp.eq.s32.totalorder %s26, 3
      %p69 = por %p67, %p68
      %p71 = scmp.ne.s32.totalorder %s54, %s70
      %p72 = scmp.eq.s32.totalorder %s26, 0
      %p73 = por %p71, %p72
      %s74 = smul.u32 %s27, 2
      %s75 = sadd.s32 %s74, %s28
      %p76 = scmp.lt.s32.totalorder %s75, 2
      %s77 = scalar_select %p76, %s75, 2
      %s78 = smul.u32 %s39, 2
      %s79 = sadd.s32 %s78, %s35
      %p80 = scmp.lt.s32.totalorder %s79, 2
      %s81 = scalar_select %p80, %s79, 2
      %s82 = ssub.s32 %s77, %s81
      %p83 = scmp.eq.s32.totalorder %s82, 0
      %s85 = sadd.s32 %s84, 1
      %s86 = scalar_select %p83, %s84, %s85
      %p89 = pneg %p83
      %p90 = scmp.eq.s32.totalorder %s20, 3
      %p91 = por %p89, %p90
      %p92 = scmp.ne.s32.totalorder %s84, %s87
      %p93 = scmp.eq.s32.totalorder %s20, 0
      %p94 = por %p92, %p93
      %p95 = scmp.ne.s32.totalorder %s84, %s87
      %p96 = scmp.eq.s32.totalorder %s25, 3
      %p97 = por %p95, %p96
      %p98 = scmp.ne.s32.totalorder %s87, %s88
      %p99 = scmp.eq.s32.totalorder %s25, 0
      %p100 = por %p98, %p99
      %p101 = scmp.ne.s32.totalorder %s87, %s88
      %p102 = scmp.eq.s32.totalorder %s26, 3
      %p103 = por %p101, %p102
      %p105 = scmp.ne.s32.totalorder %s88, %s104
      %p106 = scmp.eq.s32.totalorder %s26, 0
      %p107 = por %p105, %p106
      %s108 = ssub.s32 %s27, %s39
      %p109 = scmp.eq.s32.totalorder %s108, 0
      %s111 = sadd.s32 %s110, 1
      %s112 = scalar_select %p109, %s110, %s111
      %p115 = pneg %p109
      %p116 = scmp.eq.s32.totalorder %s20, 3
      %p117 = por %p115, %p116
      %p118 = scmp.ne.s32.totalorder %s110, %s113
      %p119 = scmp.eq.s32.totalorder %s20, 0
      %p120 = por %p118, %p119
      %p121 = scmp.ne.s32.totalorder %s110, %s113
      %p122 = scmp.eq.s32.totalorder %s25, 3
      %p123 = por %p121, %p122
      %p124 = scmp.ne.s32.totalorder %s113, %s114
      %p125 = scmp.eq.s32.totalorder %s25, 0
      %p126 = por %p124, %p125
      %p127 = scmp.ne.s32.totalorder %s113, %s114
      %p128 = scmp.eq.s32.totalorder %s26, 3
      %p129 = por %p127, %p128
      %p131 = scmp.ne.s32.totalorder %s114, %s130
      %p132 = scmp.eq.s32.totalorder %s26, 0
      %p133 = por %p131, %p132
      %p134 = scmp.le.s32.totalorder 1, %s20
      %p135 = scmp.lt.s32.totalorder %s20, 5
      %p136 = pnand %p134, %p135
      %p137 = pneg %p136
      // Predicated region
      $region9: #{tpu_custom_call.1} parent=5 // pred_check
        _
      $region10: #{tpu_custom_call.1} parent=5 // pred_check_branch
        %139 = sbr.rel (%p136) target = $region12
      $region11: #{tpu_custom_call.1} parent=5 // pred_region
        %s140 = ssub.s32 %s20, 1
      $region12: #{tpu_custom_call.1} parent=5 // pred_fallthru
        _
      %p141 = scmp.lt.s32.totalorder %s20, 4
      // Predicated region
      $region13: #{tpu_custom_call.1} parent=5 // pred_check
        %p142 = pneg %p141
      $region14: #{tpu_custom_call.1} parent=5 // pred_check_branch
        %144 = sbr.rel (%p142) target = $region16
      $region15: #{tpu_custom_call.1} parent=5 // pred_region
        // Predicated region
        $region17: #{tpu_custom_call.1} parent=15 // pred_check
          %p145 = pneg %p60
        $region18: #{tpu_custom_call.1} parent=15 // pred_check_branch
          %147 = sbr.rel (%p145) target = $region20
        $region19: #{tpu_custom_call.1} parent=15 // pred_region
          %s148 = sand.u32 %s50, 1
          %s149 = scalar_lea.sflag [#allocation7], %s148
          %s150 = sand.u32 %s50, 1
          %s151 = smul.addr %s150, 24
          %s152 = scalar_lea.vmem [#allocation6], %s151
          %s153 = smul.u32 %s27, 2
          %s154 = sadd.s32 %s153, %s28
          %p155 = scmp.lt.s32.totalorder %s154, 2
          %s156 = scalar_select %p155, %s154, 2
          %s158 = ssub.s32 384, 384
          %159 = vsyncadd %s149, %s158
          %s160 = smul.addr %s156, 128
          %s161 = scalar_lea.hbm %s1, %s160
          %s162 = sshll.u32 %s152, 4
          %s163 = int_to_ptr.vmem [resolvable:$true] %s162
          %168 = dma.hbm_to_vmem [thread:$0]  %s161, 384, %s163, %s149, 384, 128, 8
        $region20: #{tpu_custom_call.1} parent=15 // pred_fallthru
          _
        // Predicated region
        $region21: #{tpu_custom_call.1} parent=15 // pred_check
          %p169 = pneg %p94
        $region22: #{tpu_custom_call.1} parent=15 // pred_check_branch
          %171 = sbr.rel (%p169) target = $region24
        $region23: #{tpu_custom_call.1} parent=15 // pred_region
          %s172 = sand.u32 %s84, 1
          %s173 = scalar_lea.sflag [#allocation10], %s172
          %s174 = sand.u32 %s84, 1
          %s175 = smul.addr %s174, 4
          %s176 = scalar_lea.vmem [#allocation9], %s175
          %s177 = smul.u32 %s27, 2
          %s178 = sadd.s32 %s177, %s28
          %p179 = scmp.lt.s32.totalorder %s178, 2
          %s180 = scalar_select %p179, %s178, 2
          %s182 = ssub.s32 64, 64
          %183 = vsyncadd %s173, %s182
          %s184 = smul.addr %s180, 64
          %s185 = scalar_lea.hbm %s2, %s184
          %s187 = sshll.u32 %s176, 4
          %s188 = int_to_ptr.vmem [resolvable:$true] %s187
          %190 = dma.hbm_to_vmem [thread:$0]  %s185, 64, %s188, %s173
        $region24: #{tpu_custom_call.1} parent=15 // pred_fallthru
          _
      $region16: #{tpu_custom_call.1} parent=5 // pred_fallthru
        _
      %p191 = scmp.le.s32.totalorder 1, %s20
      %p192 = scmp.lt.s32.totalorder %s20, 5
      %p193 = pnand %p191, %p192
      %p194 = pneg %p193
      // Predicated region
      $region25: #{tpu_custom_call.1} parent=5 // pred_check
        _
      $region26: #{tpu_custom_call.1} parent=5 // pred_check_branch
        %196 = sbr.rel (%p193) target = $region28
      $region27: #{tpu_custom_call.1} parent=5 // pred_region
        %s197 = ssub.s32 %s20, 1
        %s198 = sand.u32 %s53, 1
        %s199 = scalar_lea.sflag [#allocation7], %s198
        %s200 = sand.u32 %s53, 1
        %s201 = smul.addr %s200, 24
        %s202 = scalar_lea.vmem [#allocation6], %s201
        // Predicated region
        $region29: #{tpu_custom_call.1} parent=27 // pred_check
          %p203 = pneg %p66
        $region30: #{tpu_custom_call.1} parent=27 // pred_check_branch
          %205 = sbr.rel (%p203) target = $region32
        $region31: #{tpu_custom_call.1} parent=27 // pred_region
          %206 = dma.done %s199, 384
        $region32: #{tpu_custom_call.1} parent=27 // pred_fallthru
          _
        %s207 = sand.u32 %s87, 1
        %s208 = scalar_lea.sflag [#allocation10], %s207
        %s209 = sand.u32 %s87, 1
        %s210 = smul.addr %s209, 4
        %s211 = scalar_lea.vmem [#allocation9], %s210
        // Predicated region
        $region33: #{tpu_custom_call.1} parent=27 // pred_check
          %p212 = pneg %p100
        $region34: #{tpu_custom_call.1} parent=27 // pred_check_branch
          %214 = sbr.rel (%p212) target = $region36
        $region35: #{tpu_custom_call.1} parent=27 // pred_region
          %215 = dma.done %s208, 64
        $region36: #{tpu_custom_call.1} parent=27 // pred_fallthru
          _
        %s216 = sand.u32 %s53, 1
        %s217 = scalar_lea.sflag [#allocation7], %s216
        %s218 = sand.u32 %s53, 1
        %s219 = smul.addr %s218, 24
        %s220 = scalar_lea.vmem [#allocation6], %s219
        %p221 = pneg %p66
        %p222 = pneg %p63
        %s223 = sand.u32 %s87, 1
        %s224 = scalar_lea.sflag [#allocation10], %s223
        %s225 = sand.u32 %s87, 1
        %s226 = smul.addr %s225, 4
        %s227 = scalar_lea.vmem [#allocation9], %s226
        %p228 = pneg %p100
        %p229 = pneg %p97
        %p230 = pneg %p126
        %p231 = pneg %p123
        %s232 = sand.u32 %s113, 1
        %s233 = scalar_lea.sflag [#allocation8], %s232
        %s234 = sand.u32 %s113, 1
        %s235 = smul.addr %s234, 8
        %s236 = scalar_lea.vmem [#allocation11], %s235
        %s237 = smul.u32 %s29, 2
        %s238 = sadd.s32 %s237, %s30
        %p239 = scmp.lt.s32.totalorder %s238, 2
        %s240 = scalar_select %p239, %s238, 2
        %s241 = smul.u32 %s29, 2
        %s242 = sadd.s32 %s241, %s30
        %p243 = scmp.lt.s32.totalorder %s242, 2
        %s244 = scalar_select %p243, %s242, 2
        %p246 = scmp.eq.s32.totalorder %s30, 0
        // Predicated region
        $region37: #{tpu_custom_call.1} parent=27 // pred_check
          %p247 = pneg %p246
        $region38: #{tpu_custom_call.1} parent=27 // pred_check_branch
          %249 = sbr.rel (%p247) target = $region40
        $region39: #{tpu_custom_call.1} parent=27 // pred_region
          %250 = vst [vmem:[#allocation4] sm:$0xf] 0.0
          $region41: #{tpu_custom_call.1} parent=39
            #allocation12 [shape = 's32[1]{0}', space=sflag, size = 0x4, scoped, tag = 'scoped memory for tpu_custom_call.1']
            // Predicated region
            $region42: #{tpu_custom_call.1} parent=41 // pred_check
              _
            $region43: #{tpu_custom_call.1} parent=41 // pred_check_branch
              %252 = sbr.rel target = $region45
            $region44: #{tpu_custom_call.1} parent=41 // pred_region
              %253 = sst [smem:[#allocation15]] [#allocation14]
              %254 = sst [smem:[#allocation16]] [#allocation13]
            $region45: #{tpu_custom_call.1} parent=41 // pred_fallthru
              _
            %256 = shalt.err (0)
            %s258 = sshll.u32 [#allocation2], 4
            %s259 = int_to_ptr.vmem [resolvable:$true] %s258
            %261 = dma.hbm_to_vmem [thread:$0]  %s0, 256, %s259, [#allocation12]
            %s262 = smul.u32 16, 1
            %s263 = sshll.u32 %s262, 4
            %264 = dma.done [#allocation12], %s263
          %v265 = vld [vmem:[#allocation2] sm:$0xff]
          %v266 = vld [vmem:[#allocation2 + $0x8] sm:$0xff]
          %v267 = vmul.f32 %v265, 5.0
          %v268 = vmul.f32 %v266, 5.0
          %v269 = vlaneseq
          %v270 = vshrl.u32 %v269, 7
          %v271 = vadd.s32 %v270, 8
          %v272 = vlaneseq
          %v273 = vand.u32 %v272, 127
          %vm274 = vcmp.eq.s32.totalorder %v270, %v273
          %vm275 = vcmp.eq.s32.totalorder %v271, %v273
          %v276 = vsel %vm274, -1e+12, %v267
          %v277 = vsel %vm275, -1e+12, %v268
          %vm278 = vcmask 195584
          %v279 = vsel %vm278, %v276, -inf
          %280 = vmax.xlane.f32.xlu0 %v279
          %v281 = vpop.xlane.xlu0 %280
          %v282 = vsel %vm278, %v277, -inf
          %283 = vmax.xlane.f32.xlu0 %v282
          %v284 = vpop.xlane.xlu0 %283
          %v285 = vsub.f32 %v276, %v281
          %v286 = vsub.f32 %v277, %v284
          %v287 = vmul.f32 %v285, 1.442695
          %v288 = vpow.pop %v287
          %v289 = vmul.f32 %v286, 1.442695
          %v290 = vpow.pop %v289
          %v291 = vsel %vm278, %v288, 0.0
          %292 = vadd.xlane.f32.xlu0 %v291
          %v293 = vpop.xlane.xlu0 %292
          %v294 = vsel %vm278, %v290, 0.0
          %295 = vadd.xlane.f32.xlu0 %v294
          %v296 = vpop.xlane.xlu0 %295
          %v297 = vrcp.pop %v293
          %v298 = vmul.f32 %v288, %v297
          %v299 = vrcp.pop %v296
          %v300 = vmul.f32 %v290, %v299
          %vm301 = vcmp.lt.s32.totalorder %v270, 4
          %vm302 = vcmp.lt.s32.totalorder %v271, 4
          %v303 = vsel %vm301, %v298, 0.0
          %v304 = vsel %vm302, %v300, 0.0
          %v305 = vpack.c.bf16 %v304, %v303
          %306 = vst.msk [vmem:[#allocation3] sm:$0xff] %vm278, %v305
          %p307 = scmp.eq.s32.totalorder %s29, 0
          // Predicated region
          $region46: #{tpu_custom_call.1} parent=39 // pred_check
            %p308 = pneg %p307
          $region47: #{tpu_custom_call.1} parent=39 // pred_check_branch
            %310 = sbr.rel (%p308) target = $region49
          $region48: #{tpu_custom_call.1} parent=39 // pred_region
            %311 = vst.msk [vmem:[#allocation2] sm:$0xff] %vm278, %v298
            %312 = vst.msk [vmem:[#allocation2 + $0x8] sm:$0xff] %vm278, %v300
            $region50: #{tpu_custom_call.1} parent=48
              #allocation17 [shape = 's32[1]{0}', space=sflag, size = 0x4, scoped, tag = 'scoped memory for tpu_custom_call.1']
              %s313 = scalar_lea.hbm %s0, 256
              %s314 = scalar_lea.vmem [#allocation2], 16
              // Predicated region
              $region51: #{tpu_custom_call.1} parent=50 // pred_check
                _
              $region52: #{tpu_custom_call.1} parent=50 // pred_check_branch
                %316 = sbr.rel target = $region54
              $region53: #{tpu_custom_call.1} parent=50 // pred_region
                %317 = sst [smem:[#allocation15]] [#allocation19]
                %318 = sst [smem:[#allocation16]] [#allocation18]
              $region54: #{tpu_custom_call.1} parent=50 // pred_fallthru
                _
              %320 = shalt.err (0)
              %s322 = sshll.u32 %s314, 4
              %s323 = int_to_ptr.vmem [resolvable:$true] %s322
              %325 = dma.hbm_to_vmem [thread:$0]  %s313, 128, %s323, [#allocation17]
              %s326 = smul.u32 8, 1
              %s327 = sshll.u32 %s326, 4
              %328 = dma.done [#allocation17], %s327
            %v329 = vld [vmem:[#allocation2 + $0x10] sm:$0xff]
            %v330 = vmul.f32 %v329, 5.0
            %v331 = vadd.s32 %v270, 16
            %vm332 = vcmp.eq.s32.totalorder %v273, %v331
            %v333 = vsel %vm332, -1e+12, %v330
            %v334 = vsel %vm278, %v333, -inf
            %335 = vmax.xlane.f32.xlu0 %v334
            %v336 = vpop.xlane.xlu0 %335
            %v337 = vsub.f32 %v333, %v336
            %v338 = vmul.f32 %v337, 1.442695
            %v339 = vpow.pop %v338
            %v340 = vsel %vm278, %v339, 0.0
            %341 = vadd.xlane.f32.xlu0 %v340
            %v342 = vpop.xlane.xlu0 %341
            %v343 = vrcp.pop %v342
            %v344 = vmul.f32 %v339, %v343
            %345 = vst.msk [vmem:[#allocation2 + $0x10] sm:$0xff] %vm278, %v344
            // Predicated region
            $region55: #{tpu_custom_call.1} parent=48 // pred_check
              _
            $region56: #{tpu_custom_call.1} parent=48 // pred_check_branch
              %347 = sbr.rel target = $region58
            $region57: #{tpu_custom_call.1} parent=48 // pred_region
              %348 = sst [smem:[#allocation15]] [#allocation21]
              %349 = sst [smem:[#allocation16]] [#allocation20]
            $region58: #{tpu_custom_call.1} parent=48 // pred_fallthru
              _
            %351 = shalt.err (0)
            %s353 = sshll.u32 [#allocation2], 4
            %s354 = int_to_ptr.vmem [resolvable:$true] %s353
            %356 = dma.vmem_to_hbm [thread:$0]  %s354, 384, %s4, [#allocation5]
          $region49: #{tpu_custom_call.1} parent=39 // pred_fallthru
            _
        $region40: #{tpu_custom_call.1} parent=27 // pred_fallthru
          _
        %v357 = vld [vmem:[%s202] sm:$0xff]
        %v358 = vld [vmem:[%s202 + $0x8] sm:$0xff]
        %v359 = vld [vmem:[%s202 + $0x10] sm:$0xff]
        %v360 = vpack.c.bf16 %v358, %v357
        %v361 = vpack.c.bf16 %v359, %v359
        %v362 = vld [vmem:[#allocation3] sm:$0xff]
        %vm363 = vcmask 195584
        %v365 = vsel %vm363, %v362, 0
        %vm367 = vcmask 1043456
        %v369 = vsel %vm367, %v361, 0
        %371 = vmatprep.subr.bf16.mxu0 0
        %372 = vmatpush1.bf16.msra.mxu0 %v360
        %373 = vmatprep.subr.bf16.mxu0 0
        %374 = vmatpush1.bf16.msra.mxu0 %v369
        %375 = vmatprep.subr.bf16.mxu0 0
        %376 = vmatpush1.bf16.msra.mxu0 0
        %377 = vmatprep.subr.bf16.mxu0 0
        %378 = vmatpush1.bf16.msra.mxu0 0
        %379 = vmatprep.subr.bf16.mxu0 0
        %380 = vmatpush1.bf16.msra.mxu0 0
        %381 = vmatprep.subr.bf16.mxu0 0
        %382 = vmatpush1.bf16.msra.mxu0 0
        %383 = vmatprep.subr.bf16.mxu0 0
        %384 = vmatpush1.bf16.msra.mxu0 0
        %385 = vmatprep.subr.bf16.mxu0 0
        %386 = vmatpush1.bf16.msra.mxu0 0
        %387 = vmatprep.subr.bf16.mxu0 0
        %388 = vmatpush1.bf16.msra.mxu0 0
        %389 = vmatprep.subr.bf16.mxu0 0
        %390 = vmatpush1.bf16.msra.mxu0 0
        %391 = vmatprep.subr.bf16.mxu0 0
        %392 = vmatpush1.bf16.msra.mxu0 0
        %393 = vmatprep.subr.bf16.mxu0 0
        %394 = vmatpush1.bf16.msra.mxu0 0
        %395 = vmatprep.subr.bf16.mxu0 0
        %396 = vmatpush1.bf16.msra.mxu0 0
        %397 = vmatprep.subr.bf16.mxu0 0
        %398 = vmatpush1.bf16.msra.mxu0 0
        %399 = vmatprep.subr.bf16.mxu0 0
        %400 = vmatpush1.bf16.msra.mxu0 0
        %401 = vmatprep.subr.bf16.mxu0 0
        %402 = vmatpush1.bf16.msra.mxu0 0
        %403 = vmatprep.mubr.bf16.mxu0 0
        %404 = vmatmul.mubr.bf16.gmra.mrb[0].mxu0 %v365
        %v405 = vpop.f32.mrb[0].mxu0
        %v406 = vadd.f32 0.0, %v405
        %v407 = vpop.f32.mrb[0].mxu0
        %v408 = vpop.f32.mrb[0].mxu0
        %v409 = vpop.f32.mrb[0].mxu0
        %410 = vdwg.mxu0
        %v411 = vld [vmem:[%s211] sm:$0xf]
        %v412 = vsub.f32 %v406, %v411
        %s413 = smul.u32 %s29, 2
        %s414 = sadd.s32 %s413, %s30
        %v415 = vlaneseq
        %v416 = vand.u32 %v415, 127
        %s417 = smul.u32 %s414, 128
        %s418 = ssub.s32 384, %s417
        %v419 = vstv %s418
        %vm420 = vcmp.lt.s32.totalorder %v416, %v419
        %v421 = vsel %vm420, %v412, 0.0
        %v422 = vld [vmem:[#allocation4] sm:$0xf]
        %v423 = vmul.f32 %v421, %v421
        %v424 = vadd.f32 %v422, %v423
        %425 = vst [vmem:[#allocation4] sm:$0xf] %v424
        %p426 = scmp.eq.s32.totalorder %s30, 1
        // Predicated region
        $region59: #{tpu_custom_call.1} parent=27 // pred_check
          %p427 = pneg %p426
        $region60: #{tpu_custom_call.1} parent=27 // pred_check_branch
          %429 = sbr.rel (%p427) target = $region62
        $region61: #{tpu_custom_call.1} parent=27 // pred_region
          %v430 = vld [vmem:[#allocation4] sm:$0xf]
          %v431 = vsel %vm367, %v430, 0.0
          %432 = vadd.xlane.f32.xlu0 %v431
          %v433 = vpop.xlane.xlu0 %432
          %v434 = vrot.slane %v433, 4
          %v435 = vadd.f32 %v433, %v434
          %v436 = vrot.slane %v435, 2
          %v437 = vadd.f32 %v435, %v436
          %v438 = vrot.slane %v437, 1
          %v439 = vadd.f32 %v437, %v438
          %s440 = vtos %v439
          %v441 = vstv %s440
          %442 = vst [vmem:[%s236] sm:$0xff] %v441
          %p443 = scmp.eq.s32.totalorder %s29, 0
          // Predicated region
          $region63: #{tpu_custom_call.1} parent=61 // pred_check
            %p444 = pneg %p443
          $region64: #{tpu_custom_call.1} parent=61 // pred_check_branch
            %446 = sbr.rel (%p444) target = $region66
          $region65: #{tpu_custom_call.1} parent=61 // pred_region
            %s447 = smul.u32 24, 1
            %s448 = sshll.u32 %s447, 4
            %449 = dma.done [#allocation5], %s448
          $region66: #{tpu_custom_call.1} parent=61 // pred_fallthru
            _
        $region62: #{tpu_custom_call.1} parent=27 // pred_fallthru
          _
        %s450 = sand.u32 %s113, 1
        %s451 = scalar_lea.sflag [#allocation8], %s450
        %s452 = sand.u32 %s113, 1
        %s453 = smul.addr %s452, 8
        %s454 = scalar_lea.vmem [#allocation11], %s453
        // Predicated region
        $region67: #{tpu_custom_call.1} parent=27 // pred_check
          %p455 = pneg %p123
        $region68: #{tpu_custom_call.1} parent=27 // pred_check_branch
          %457 = sbr.rel (%p455) target = $region70
        $region69: #{tpu_custom_call.1} parent=27 // pred_region
          %s459 = ssub.s32 128, 128
          %460 = vsyncadd %s451, %s459
          %s461 = smul.addr %s29, 128
          %s462 = scalar_lea.hbm %s3, %s461
          %s464 = sshll.u32 %s454, 4
          %s465 = int_to_ptr.vmem [resolvable:$true] %s464
          %467 = dma.vmem_to_hbm [thread:$0]  %s465, 128, %s462, %s451
        $region70: #{tpu_custom_call.1} parent=27 // pred_fallthru
          _
      $region28: #{tpu_custom_call.1} parent=5 // pred_fallthru
        _
      %p468 = scmp.le.s32.totalorder 2, %s20
      // Predicated region
      $region71: #{tpu_custom_call.1} parent=5 // pred_check
        %p469 = pneg %p468
      $region72: #{tpu_custom_call.1} parent=5 // pred_check_branch
        %471 = sbr.rel (%p469) target = $region74
      $region73: #{tpu_custom_call.1} parent=5 // pred_region
        %s472 = ssub.s32 %s20, 2
        // Predicated region
        $region75: #{tpu_custom_call.1} parent=73 // pred_check
          %p473 = pneg %p129
        $region76: #{tpu_custom_call.1} parent=73 // pred_check_branch
          %475 = sbr.rel (%p473) target = $region78
        $region77: #{tpu_custom_call.1} parent=73 // pred_region
          %s476 = sand.u32 %s114, 1
          %s477 = scalar_lea.sflag [#allocation8], %s476
          %s478 = sand.u32 %s114, 1
          %s479 = smul.addr %s478, 8
          %s480 = scalar_lea.vmem [#allocation11], %s479
          %481 = dma.done %s477, 128
        $region78: #{tpu_custom_call.1} parent=73 // pred_fallthru
          _
      $region74: #{tpu_custom_call.1} parent=5 // pred_fallthru
        _
    $region6: #{tpu_custom_call.1} parent=1 // loop_footer
      %s24 = sadd.s32 1, %s20
    $region7: #{tpu_custom_call.1} parent=1 // loop_footer_branch
      %19 = sbr.rel target = $region3
    $region8: #{tpu_custom_call.1} parent=1 // loop_exit
      _
    %482 = vsyncpa [#allocation7], 1
    %s483 = scalar_lea.sflag [#allocation7], 1
    %484 = vsyncpa %s483, 1
    %485 = vsyncpa [#allocation10], 1
    %s486 = scalar_lea.sflag [#allocation10], 1
    %487 = vsyncpa %s486, 1
    %488 = vsyncpa [#allocation8], 1
    %s489 = scalar_lea.sflag [#allocation8], 1
    %490 = vsyncpa %s489, 1
  %491 = vsyncmov [#allocation5]
  %s492 = vpop.sfrf %491
  %p493 = scmp.eq.s32.totalorder %s492, 0
  %p494 = pneg %p493
  %496 = shalt.err (%p494)

</llo_original>
